<compile_context>
chip_gen: v7x
topology: tpu7x:2x2x1
jax: 0.10.0
libtpu: 0.0.40
codegen_flags: <defaults>
</compile_context>

<pallas_src>
import functools

import jax
import jax.numpy as jnp
from jax.experimental import pallas as pl
from jax.experimental.pallas import tpu as pltpu


def _cdiv(a: int, b: int) -> int:
    return -(-a // b)


def _round_up(a: int, b: int) -> int:
    return _cdiv(a, b) * b


def _vmem_budgets():
    """(scoped vmem limit, per-kernel tile budget), generation-aware."""
    try:
        cap = int(pltpu.get_tpu_info().vmem_capacity_bytes)
    except Exception:
        cap = 64 * 1024 * 1024  # conservative (v7x per-TC) if query unavailable
    # v7x (64 MiB):  limit = 32 MiB, tile budget = 16 MiB
    # v5e/v6e (128): limit = 48 MiB, tile budget = 32 MiB
    vmem_limit = min(cap // 2, 48 * 1024 * 1024)
    tile_budget = cap // 4
    return vmem_limit, tile_budget


def _pick_tile_rows(rows: int, d_pad: int, in_bytes: int, out_bytes: int, *,
                    budget_bytes: int,
                    target_block_bytes: int = 4 * 1024 * 1024,
                    min_blocks: int = 8) -> int:
    """Largest sublane-aligned row tile that
       (a) keeps double-buffered in/out tiles + f32 temporaries in budget,
       (b) stays near a ~4 MiB input block (diminishing returns beyond that),
       (c) leaves >= min_blocks grid steps when there is enough work,
       (d) never exceeds the (aligned) row count.
    """
    sublane = {4: 8, 2: 16, 1: 32}.get(in_bytes, 8)
    # double-buffered input + output tiles plus ~3 f32-wide in-kernel temps
    per_row_resident = d_pad * (2 * in_bytes + 2 * out_bytes + 3 * 4)
    t = budget_bytes // max(per_row_resident, 1)
    # bytes-per-block target replaces the old fixed max_rows cap
    t = min(t, max(target_block_bytes // max(d_pad * in_bytes, 1), sublane))
    # keep the grid deep enough for megacore sharding + DMA/compute overlap
    if rows >= min_blocks * sublane:
        t = min(t, _round_up(_cdiv(rows, min_blocks), sublane))
    # never allocate a block larger than the array
    t = min(t, _round_up(rows, sublane))
    t = max(sublane, (t // sublane) * sublane)
    return int(t)


def _layernorm_kernel(x_ref, g_ref, b_ref, o_ref, *, eps: float,
                      d_valid: int, d_pad: int):
    # x_ref: (TILE_ROWS, D_pad), g_ref/b_ref: (1, D_pad)
    x = x_ref[...].astype(jnp.float32)
    inv_d = 1.0 / d_valid

    if d_pad != d_valid:
        # Lane-mask the padded feature columns so they never affect the stats.
        lane = jax.lax.broadcasted_iota(jnp.int32, x.shape, 1)
        valid = lane < d_valid
        x = jnp.where(valid, x, 0.0)
        mean = jnp.sum(x, axis=-1, keepdims=True) * inv_d
        xc = jnp.where(valid, x - mean, 0.0)
    else:
        mean = jnp.sum(x, axis=-1, keepdims=True) * inv_d
        xc = x - mean

    # Two-pass (numerically stable) biased variance, matching torch LayerNorm.
    var = jnp.sum(xc * xc, axis=-1, keepdims=True) * inv_d
    inv = jax.lax.rsqrt(var + eps)

    gamma = g_ref[...].astype(jnp.float32)
    beta = b_ref[...].astype(jnp.float32)
    o_ref[...] = (xc * inv * gamma + beta).astype(o_ref.dtype)


def layer_norm_pallas(x, gamma, beta, *, eps: float = 1e-5, tile_rows=None):
    """LayerNorm over the last axis of x, elementwise affine (gamma, beta)."""
    orig_shape = x.shape
    d = orig_shape[-1]
    x2 = x.reshape(-1, d)
    rows = x2.shape[0]

    # Keep the output block lane-dense: pad the feature dim to a multiple of
    # 128 in the wrapper and mask the reduction in-kernel.
    d_pad = _round_up(d, 128)
    gamma2 = gamma.reshape(1, d)
    beta2 = beta.reshape(1, d)
    if d_pad != d:
        x2 = jnp.pad(x2, ((0, 0), (0, d_pad - d)))
        gamma2 = jnp.pad(gamma2, ((0, 0), (0, d_pad - d)))
        beta2 = jnp.pad(beta2, ((0, 0), (0, d_pad - d)))

    in_bytes = jnp.dtype(x.dtype).itemsize
    out_bytes = in_bytes
    vmem_limit, tile_budget = _vmem_budgets()
    if tile_rows is None:
        tile_rows = _pick_tile_rows(rows, d_pad, in_bytes, out_bytes,
                                    budget_bytes=tile_budget)

    num_blocks = _cdiv(rows, tile_rows)
    grid = (num_blocks,)

    # When blocks are forced small and the grid is deep, a third input buffer
    # hides the short per-block DMA latency (mainly for v7x HBM rates).
    block_in_bytes = tile_rows * d_pad * in_bytes
    x_spec_kwargs = {}
    if num_blocks >= 4 and block_in_bytes < (512 << 10):
        x_spec_kwargs = dict(pipeline_mode=pl.Buffered(3))
    try:
        x_spec = pl.BlockSpec((tile_rows, d_pad), lambda i: (i, 0),
                              **x_spec_kwargs)
    except TypeError:
        x_spec = pl.BlockSpec((tile_rows, d_pad), lambda i: (i, 0))

    out = pl.pallas_call(
        functools.partial(_layernorm_kernel, eps=eps, d_valid=d, d_pad=d_pad),
        out_shape=jax.ShapeDtypeStruct((rows, d_pad), x.dtype),
        grid_spec=pl.GridSpec(
            grid=grid,
            in_specs=[
                x_spec,
                pl.BlockSpec((1, d_pad), lambda i: (0, 0)),  # gamma, resident
                pl.BlockSpec((1, d_pad), lambda i: (0, 0)),  # beta,  resident
            ],
            out_specs=pl.BlockSpec((tile_rows, d_pad), lambda i: (i, 0)),
        ),
        compiler_params=pltpu.CompilerParams(
            # Row axis is embarrassingly parallel -> shards across TCs on v7x.
            dimension_semantics=("parallel",),
            vmem_limit_bytes=vmem_limit,
        ),
    )(x2, gamma2, beta2)

    if d_pad != d:
        out = out[:, :d]
    return out.reshape(orig_shape)


def pre_norm_module(x, gamma, beta, fn):
    """Equivalent of PyTorch `LayerNorm(dim, fn).forward(x)` = fn(norm(x))."""
    # TODO(synk): fuse the norm into fn's kernel when fn is concrete.
    return fn(layer_norm_pallas(x, gamma, beta))


if __name__ == "__main__":
    key = jax.random.PRNGKey(0)
    # Small shapes consistent with LayerNorm(dim); dim=128 keeps the output
    # lane-dense without needing the padded/masked path.
    batch, seq, dim = 2, 8, 128

    x = jax.random.normal(key, (batch, seq, dim), dtype=jnp.float32)

    # nn.LayerNorm(dim) default init: weight = ones, bias = zeros.
    gamma = jnp.ones((dim,), dtype=jnp.float32)
    beta = jnp.zeros((dim,), dtype=jnp.float32)

    # `fn` is an arbitrary wrapped submodule in the PyTorch code; identity is
    # used here since no concrete fn is specified.
    fn = lambda y: y

    out = pre_norm_module(x, gamma, beta, fn)
    out = jax.block_until_ready(out)

    # Sanity check against a pure-JAX two-pass reference (matches torch).
    mean = jnp.mean(x, axis=-1, keepdims=True)
    var = jnp.mean((x - mean) ** 2, axis=-1, keepdims=True)
    ref = (x - mean) / jnp.sqrt(var + 1e-5) * gamma + beta
    assert out.shape == x.shape and out.dtype == x.dtype
    assert jnp.max(jnp.abs(out - ref)) < 1e-4

    print("KERNEL_OK")
</pallas_src>

<mosaic_0001>
module attributes {stable_mosaic.version = 11 : i64} {
  func.func @_layernorm_kernel(%arg0: i32, %arg1: memref<16x128xf32, #tpu.memory_space<vmem>>, %arg2: memref<1x128xf32, #tpu.memory_space<vmem>>, %arg3: memref<1x128xf32, #tpu.memory_space<vmem>>, %arg4: memref<16x128xf32, #tpu.memory_space<vmem>>) attributes {dimension_semantics = [#tpu.dimension_semantics<parallel>], iteration_bounds = array<i64: 1>, scalar_prefetch = 0 : i64, scratch_operands = 0 : i64, tpu.core_type = #tpu.core_type<tc>, window_params = [{transform_indices = @transform_0, window_bounds = array<i64: 16, 128>}, {pipeline_mode = #tpu.pipeline_mode<synchronous>, transform_indices = @transform_1, window_bounds = array<i64: 1, 128>}, {pipeline_mode = #tpu.pipeline_mode<synchronous>, transform_indices = @transform_2, window_bounds = array<i64: 1, 128>}, {transform_indices = @transform_3, window_bounds = array<i64: 16, 128>}]} {
    %c0 = arith.constant 0 : index
    %c0_0 = arith.constant 0 : index
    %0 = vector.load %arg1[%c0, %c0_0] : memref<16x128xf32, #tpu.memory_space<vmem>>, vector<16x128xf32>
    %cst = arith.constant dense<0.000000e+00> : vector<16xf32>
    %1 = vector.multi_reduction <add>, %0, %cst [1] : vector<16x128xf32> to vector<16xf32>
    %2 = vector.shape_cast %1 : vector<16xf32> to vector<16x1xf32>
    %cst_1 = arith.constant 7.812500e-03 : f32
    %3 = vector.broadcast %cst_1 : f32 to vector<16x1xf32>
    %4 = arith.mulf %2, %3 : vector<16x1xf32>
    %5 = vector.broadcast %4 : vector<16x1xf32> to vector<16x128xf32>
    %6 = arith.subf %0, %5 : vector<16x128xf32>
    %7 = arith.mulf %6, %6 : vector<16x128xf32>
    %cst_2 = arith.constant dense<0.000000e+00> : vector<16xf32>
    %8 = vector.multi_reduction <add>, %7, %cst_2 [1] : vector<16x128xf32> to vector<16xf32>
    %9 = vector.shape_cast %8 : vector<16xf32> to vector<16x1xf32>
    %cst_3 = arith.constant 7.812500e-03 : f32
    %10 = vector.broadcast %cst_3 : f32 to vector<16x1xf32>
    %11 = arith.mulf %9, %10 : vector<16x1xf32>
    %cst_4 = arith.constant 9.99999974E-6 : f32
    %12 = vector.broadcast %cst_4 : f32 to vector<16x1xf32>
    %13 = arith.addf %11, %12 : vector<16x1xf32>
    %14 = math.rsqrt %13 : vector<16x1xf32>
    %c0_5 = arith.constant 0 : index
    %c0_6 = arith.constant 0 : index
    %15 = vector.load %arg2[%c0_5, %c0_6] : memref<1x128xf32, #tpu.memory_space<vmem>>, vector<1x128xf32>
    %c0_7 = arith.constant 0 : index
    %c0_8 = arith.constant 0 : index
    %16 = vector.load %arg3[%c0_7, %c0_8] : memref<1x128xf32, #tpu.memory_space<vmem>>, vector<1x128xf32>
    %17 = vector.broadcast %14 : vector<16x1xf32> to vector<16x128xf32>
    %18 = arith.mulf %6, %17 : vector<16x128xf32>
    %19 = vector.broadcast %15 : vector<1x128xf32> to vector<16x128xf32>
    %20 = arith.mulf %18, %19 : vector<16x128xf32>
    %21 = vector.broadcast %16 : vector<1x128xf32> to vector<16x128xf32>
    %22 = arith.addf %20, %21 : vector<16x128xf32>
    %c0_9 = arith.constant 0 : index
    %c0_10 = arith.constant 0 : index
    %23 = vector.load %arg4[%c0_9, %c0_10] : memref<16x128xf32, #tpu.memory_space<vmem>>, vector<16x128xf32>
    tpu.vector_store %arg4[%c0_9, %c0_10], %22 {strides = array<i32>} : memref<16x128xf32, #tpu.memory_space<vmem>>, vector<16x128xf32>,
    return
  }
  func.func @transform_0(%arg0: i32) -> (i32, i32) {
    %c0_i32 = arith.constant 0 : i32
    %c0_i32_0 = arith.constant 0 : i32
    return %arg0, %c0_i32 : i32, i32
  }
  func.func @transform_1(%arg0: i32) -> (i32, i32) {
    %c0_i32 = arith.constant 0 : i32
    %c0_i32_0 = arith.constant 0 : i32
    %c0_i32_1 = arith.constant 0 : i32
    return %c0_i32, %c0_i32_0 : i32, i32
  }
  func.func @transform_2(%arg0: i32) -> (i32, i32) {
    %c0_i32 = arith.constant 0 : i32
    %c0_i32_0 = arith.constant 0 : i32
    %c0_i32_1 = arith.constant 0 : i32
    return %c0_i32, %c0_i32_0 : i32, i32
  }
  func.func @transform_3(%arg0: i32) -> (i32, i32) {
    %c0_i32 = arith.constant 0 : i32
    %c0_i32_0 = arith.constant 0 : i32
    return %arg0, %c0_i32 : i32, i32
  }
}

</mosaic_0001>

<llo_original>
// kernel: tpu_custom_call.1
$region0: #{tpu_custom_call.1}
  #allocation0 [shape = 'u32[]', space=smem, size = 0x4, offset = 0x4, fixed_abs, tag = 'smem constant byte address 0x4 - core index']
  #allocation1 [shape = 'u32[144,128]{1,0:T(1,128)}', space=vmem, size = 0x12000, scoped, tag = 'internal scratch']
  %s0 = inlined_call_operand.hbm [shape: f32[16,128], index: 0, kind: input, shape index: {}]
  %s1 = inlined_call_operand.vmem [shape: f32[1,128], index: 1, kind: input, shape index: {}]
  %s2 = inlined_call_operand.vmem [shape: f32[1,128], index: 2, kind: input, shape index: {}]
  %s3 = inlined_call_operand.hbm [shape: f32[16,128], index: 3, kind: output, shape index: {}]
  %s4 = sld [smem:[#allocation0]]
  $region26: #{tpu_custom_call.1} parent=0
    _
  %s6 = ssub.s32 1, %s4
  %s7 = scalar_select 0, %s6, %s4
  $region1: #{tpu_custom_call.1} parent=0
    #allocation2 [shape = 'u8[8192]{0}', space=vmem, size = 0x2000, scoped, tag = 'input window, operand 0, single buffered']
    #allocation3 [shape = 's32[1]{0}', space=sflag, size = 0x4, scoped, tag = 'scoped memory for tpu_custom_call.1']
    #allocation4 [shape = 's32[1]{0}', space=sflag, size = 0x4, scoped, tag = 'scoped memory for tpu_custom_call.1']
    #allocation5 [shape = 'u8[8192]{0}', space=vmem, size = 0x2000, scoped, tag = 'output window, operand 0, single buffered']
    %8 = vsyncpa [#allocation3], 0
    %9 = vsyncpa [#allocation4], 0
    // Predicated region
    $region2: #{tpu_custom_call.1} parent=1 // pred_check
      _
    $region3: #{tpu_custom_call.1} parent=1 // pred_check_branch
      %11 = sbr.rel (0) target = $region5
    $region4: #{tpu_custom_call.1} parent=1 // pred_region
      %s13 = ssub.s32 256, 256
      %14 = vsyncadd [#allocation3], %s13
      %s15 = sshll.u32 [#allocation2], 4
      %s16 = int_to_ptr.vmem [resolvable:$true] %s15
      %21 = dma.hbm_to_vmem [thread:$0]  %s0, 256, %s16, [#allocation3], 128, 128, 8
    $region5: #{tpu_custom_call.1} parent=1 // pred_fallthru
      _
    // Predicated region
    $region6: #{tpu_custom_call.1} parent=1 // pred_check
      _
    $region7: #{tpu_custom_call.1} parent=1 // pred_check_branch
      %23 = sbr.rel (0) target = $region9
    $region8: #{tpu_custom_call.1} parent=1 // pred_region
      _
    $region9: #{tpu_custom_call.1} parent=1 // pred_fallthru
      _
    // Predicated region
    $region10: #{tpu_custom_call.1} parent=1 // pred_check
      _
    $region11: #{tpu_custom_call.1} parent=1 // pred_check_branch
      %25 = sbr.rel (0) target = $region13
    $region12: #{tpu_custom_call.1} parent=1 // pred_region
      _
    $region13: #{tpu_custom_call.1} parent=1 // pred_fallthru
      _
    // Predicated region
    $region14: #{tpu_custom_call.1} parent=1 // pred_check
      _
    $region15: #{tpu_custom_call.1} parent=1 // pred_check_branch
      %27 = sbr.rel (0) target = $region17
    $region16: #{tpu_custom_call.1} parent=1 // pred_region
      %28 = dma.done [#allocation3], 256
    $region17: #{tpu_custom_call.1} parent=1 // pred_fallthru
      _
    %v29 = vld [vmem:[#allocation2] sm:$0xff]
    %v30 = vld [vmem:[#allocation2 + $0x8] sm:$0xff]
    %31 = vadd.xlane.f32.xlu0 %v29
    %v32 = vpop.xlane.xlu0 %31
    %33 = vadd.xlane.f32.xlu0 %v30
    %v34 = vpop.xlane.xlu0 %33
    %v35 = vmul.f32 %v32, 0.0078125
    %v36 = vmul.f32 %v34, 0.0078125
    %v37 = vsub.f32 %v29, %v35
    %v38 = vsub.f32 %v30, %v36
    %v39 = vmul.f32 %v37, %v37
    %v40 = vmul.f32 %v38, %v38
    %41 = vadd.xlane.f32.xlu0 %v39
    %v42 = vpop.xlane.xlu0 %41
    %43 = vadd.xlane.f32.xlu0 %v40
    %v44 = vpop.xlane.xlu0 %43
    %v45 = vmul.f32 %v42, 0.0078125
    %v46 = vmul.f32 %v44, 0.0078125
    %v47 = vadd.f32 %v45, 1e-05
    %v48 = vadd.f32 %v46, 1e-05
    %v49 = vrsqrt.pop %v47
    %v50 = vrsqrt.pop %v48
    %v51 = vld [vmem:[%s1] sm:$0x1]
    %v52 = vld [vmem:[%s2] sm:$0x1]
    %v53 = vmul.f32 %v37, %v49
    %v54 = vmul.f32 %v38, %v50
    %v56 = vlaneseq
    %v57 = vshrl.u32 %v56, 7
    %v58 = vsub.s32 0, %v57
    %v59 = vrot.slane %v51, %v58
    %v61 = vmul.f32 %v53, %v59
    %v62 = vmul.f32 %v54, %v59
    %v64 = vlaneseq
    %v65 = vshrl.u32 %v64, 7
    %v66 = vsub.s32 0, %v65
    %v67 = vrot.slane %v52, %v66
    %v69 = vadd.f32 %v61, %v67
    %v70 = vadd.f32 %v62, %v67
    %71 = vst [vmem:[#allocation5] sm:$0xff] %v69
    %72 = vst [vmem:[#allocation5 + $0x8] sm:$0xff] %v70
    // Predicated region
    $region18: #{tpu_custom_call.1} parent=1 // pred_check
      _
    $region19: #{tpu_custom_call.1} parent=1 // pred_check_branch
      %74 = sbr.rel (0) target = $region21
    $region20: #{tpu_custom_call.1} parent=1 // pred_region
      %s76 = ssub.s32 256, 256
      %77 = vsyncadd [#allocation4], %s76
      %s78 = sshll.u32 [#allocation5], 4
      %s79 = int_to_ptr.vmem [resolvable:$true] %s78
      %84 = dma.vmem_to_hbm [thread:$0]  %s79, 256, %s3, [#allocation4], 128, 128, 8
    $region21: #{tpu_custom_call.1} parent=1 // pred_fallthru
      _
    // Predicated region
    $region22: #{tpu_custom_call.1} parent=1 // pred_check
      _
    $region23: #{tpu_custom_call.1} parent=1 // pred_check_branch
      %86 = sbr.rel (0) target = $region25
    $region24: #{tpu_custom_call.1} parent=1 // pred_region
      %87 = dma.done [#allocation4], 256
    $region25: #{tpu_custom_call.1} parent=1 // pred_fallthru
      _
    %88 = vsyncpa [#allocation3], 1
    %89 = vsyncpa [#allocation4], 1

</llo_original>
